<compile_context>
chip_gen: v7x
topology: tpu7x:2x2x1
jax: 0.10.0
libtpu: 0.0.40
codegen_flags: <defaults>
</compile_context>

<pallas_src>
import functools

import jax
import jax.numpy as jnp
from jax.experimental import pallas as pl
from jax.experimental.pallas import tpu as pltpu

_NEG = -1e30  # "minus infinity" that is safe under exp() (no inf-inf NaNs)


def _round_up(a: int, b: int) -> int:
    return ((a + b - 1) // b) * b


# --------------------------------------------------------------------------
# Kernels
# --------------------------------------------------------------------------
def _proj_logits_kernel(x_ref, w_ref, b_ref, o_ref, lse_ref, m_ref, l_ref,
                        *, fuse_norm: bool):
    # x_ref: (tm, tk)   w_ref: (tk, tn)   b_ref: (1, tn) f32
    # o_ref: (tm, tn) f32 (resident across k)   lse_ref: (tm, 1) f32
    # m_ref / l_ref: (tm, 1) f32 running max / running sum-exp scratch.
    j = pl.program_id(1)
    k = pl.program_id(2)
    nn_ = pl.num_programs(1)
    nk = pl.num_programs(2)

    @pl.when(jnp.logical_and(j == 0, k == 0))
    def _init_stats():
        m_ref[...] = jnp.full_like(m_ref, _NEG)
        l_ref[...] = jnp.zeros_like(l_ref)

    @pl.when(k == 0)
    def _init_out():
        # Fold the bias into the accumulator init (accumulate directly into
        # the resident f32 output tile; no separate acc scratch).
        o_ref[...] = jnp.broadcast_to(b_ref[...], o_ref.shape)

    # MXU matmul on low-precision inputs with f32 accumulation.
    o_ref[...] += jnp.dot(x_ref[...], w_ref[...],
                          preferred_element_type=jnp.float32)

    @pl.when(k == nk - 1)
    def _update_stats():
        # Online log-sum-exp over vocab tiles.
        logits = o_ref[...]
        m_new = jnp.maximum(m_ref[...],
                            jnp.max(logits, axis=-1, keepdims=True))
        l_ref[...] = (l_ref[...] * jnp.exp(m_ref[...] - m_new)
                      + jnp.sum(jnp.exp(logits - m_new), axis=-1,
                                keepdims=True))
        m_ref[...] = m_new

    @pl.when(jnp.logical_and(k == nk - 1, j == nn_ - 1))
    def _finalize():
        lse = m_ref[...] + jnp.log(l_ref[...])
        lse_ref[...] = lse
        if fuse_norm:
            # Whole vocab lives in this single tile: normalize in place and
            # skip the epilogue pass entirely.
            o_ref[...] = o_ref[...] - lse


def _sub_lse_kernel(logits_ref, lse_ref, o_ref):
    # log_probs = logits - lse, done in place (logits aliased to the output).
    o_ref[...] = logits_ref[...] - lse_ref[...]


# --------------------------------------------------------------------------
# Tile selection / VMEM budget
# --------------------------------------------------------------------------
def _vmem_budget_bytes() -> int:
    try:
        cap = int(pltpu.get_tpu_info().vmem_capacity_bytes)
    except Exception:
        cap = 64 << 20  # conservative fallback, safe on every generation
    # Leave ~1/8 headroom for Mosaic internals: ~56 MiB usable on v7x
    # (64 MiB physical), ~112 MiB on v5e / v6e (128 MiB physical).
    return max(24 << 20, (cap // 8) * 7)


def _select_tiles(M: int, D: int, V: int, itemsize: int, budget: int):
    # Targets: tm=256 rows (arithmetic-intensity lever), tk=512 contraction
    # depth (multiple of 256), tn~2k vocab columns for large, lane-dense DMAs.
    tm = max(8, min(256, _round_up(M, 8)))
    tk = max(128, min(512, _round_up(D, 128)))
    tn = max(128, min(2048, _round_up(V, 128)))

    def footprint(tm_, tn_, tk_):
        return (2 * tm_ * tk_ * itemsize      # x tile (double-buffered)
                + 2 * tk_ * tn_ * itemsize    # weight slab (double-buffered)
                + 2 * tn_ * 4                 # bias tile
                + 2 * tm_ * tn_ * 4           # resident f32 logits tile (dbl)
                + 6 * tm_ * 4                 # lse out + running max/sum
                + (2 << 20))                  # slack for compiler scratch

    # Shrink against ONE combined footprint; keep tm large as long as
    # possible (weight re-streaming scales with 1/tm).
    while footprint(tm, tn, tk) > budget:
        if tn > 512:
            tn = max(128, _round_up(tn // 2, 128))
        elif tk > 256:
            tk = max(128, _round_up(tk // 2, 128))
        elif tn > 128:
            tn = max(128, _round_up(tn // 2, 128))
        elif tk > 128:
            tk = max(128, _round_up(tk // 2, 128))
        elif tm > 8:
            tm = max(8, _round_up(tm // 2, 8))
        else:
            break
    return tm, tn, tk


# --------------------------------------------------------------------------
# Wrapper
# --------------------------------------------------------------------------
@functools.partial(jax.jit, static_argnames=("compute_dtype",))
def projection_layer(x, weight, bias, *, compute_dtype=jnp.bfloat16):
    """x: (B, S, D), weight: (D, V), bias: (V,) -> (B, S, V) f32 log-probs."""
    B, S, D = x.shape
    Dw, V = weight.shape
    assert Dw == D, "weight must be (d_model, vocab_size)"
    M = B * S

    isz = jnp.dtype(compute_dtype).itemsize
    budget = _vmem_budget_bytes()
    tm, tn, tk = _select_tiles(M, D, V, isz, budget)

    M_pad = _round_up(M, tm)
    K_pad = _round_up(D, tk)
    V_pad = _round_up(V, tn)
    nm, nn_, nk = M_pad // tm, V_pad // tn, K_pad // tk

    # Operands: cast only if needed (store the weight in bf16 to avoid a
    # per-call (D, V) cast), zero-pad rows / K (contribute 0 to the dot),
    # pad vocab columns of the bias with a large negative so they vanish
    # from max / sum-exp.
    x2 = x.reshape(M, D)
    if x2.dtype != compute_dtype:
        x2 = x2.astype(compute_dtype)
    w = weight if weight.dtype == compute_dtype else weight.astype(compute_dtype)
    if (M_pad, K_pad) != (M, D):
        x2 = jnp.pad(x2, ((0, M_pad - M), (0, K_pad - D)))
    if (K_pad, V_pad) != (D, V):
        w = jnp.pad(w, ((0, K_pad - D), (0, V_pad - V)))
    b2 = jnp.pad(bias.astype(jnp.float32).reshape(1, V),
                 ((0, 0), (0, V_pad - V)), constant_values=_NEG)

    fuse_norm = (nn_ == 1)

    # Weight is re-streamed once per row tile; x once per vocab tile.
    cost = pl.CostEstimate(
        flops=2 * M_pad * K_pad * V_pad,
        transcendentals=M_pad * V_pad,
        bytes_accessed=(nn_ * M_pad * K_pad * isz          # x
                        + nm * K_pad * V_pad * isz          # weight
                        + M_pad * V_pad * 4                 # logits out
                        + M_pad * 4 + V_pad * 4),           # lse + bias
    )

    logits, lse = pl.pallas_call(
        functools.partial(_proj_logits_kernel, fuse_norm=fuse_norm),
        out_shape=(jax.ShapeDtypeStruct((M_pad, V_pad), jnp.float32),
                   jax.ShapeDtypeStruct((M_pad, 1), jnp.float32)),
        grid_spec=pltpu.PrefetchScalarGridSpec(
            num_scalar_prefetch=0,
            grid=(nm, nn_, nk),
            in_specs=[
                pl.BlockSpec((tm, tk), lambda i, j, k: (i, k)),   # x tile
                pl.BlockSpec((tk, tn), lambda i, j, k: (k, j)),   # weight slab
                pl.BlockSpec((1, tn), lambda i, j, k: (0, j)),    # bias tile
            ],
            out_specs=[
                pl.BlockSpec((tm, tn), lambda i, j, k: (i, j)),   # logits
                pl.BlockSpec((tm, 1), lambda i, j, k: (i, 0)),    # lse
            ],
            scratch_shapes=[pltpu.VMEM((tm, 1), jnp.float32),     # running max
                            pltpu.VMEM((tm, 1), jnp.float32)],    # running sum
        ),
        compiler_params=pltpu.CompilerParams(
            dimension_semantics=("parallel", "arbitrary", "arbitrary"),
            vmem_limit_bytes=budget,
        ),
        cost_estimate=cost,
    )(x2, w, b2)

    if fuse_norm:
        out = logits
    else:
        # Tiny epilogue: log_probs = logits - lse, in place via aliasing (no
        # second (M, V) HBM allocation).
        out = pl.pallas_call(
            _sub_lse_kernel,
            out_shape=jax.ShapeDtypeStruct((M_pad, V_pad), jnp.float32),
            grid_spec=pltpu.PrefetchScalarGridSpec(
                num_scalar_prefetch=0,
                grid=(nm, nn_),
                in_specs=[
                    pl.BlockSpec((tm, tn), lambda i, j: (i, j)),
                    pl.BlockSpec((tm, 1), lambda i, j: (i, 0)),
                ],
                out_specs=pl.BlockSpec((tm, tn), lambda i, j: (i, j)),
            ),
            compiler_params=pltpu.CompilerParams(
                dimension_semantics=("parallel", "parallel"),
                vmem_limit_bytes=budget,
            ),
            input_output_aliases={0: 0},
        )(logits, lse)

    if (M_pad, V_pad) != (M, V):
        out = out[:M, :V]
    return out.reshape(B, S, V)


# --------------------------------------------------------------------------
# Demo / correctness check
# --------------------------------------------------------------------------
if __name__ == "__main__":
    def _check(batch, seq, d_model, vocab_size, case):
        key = jax.random.fold_in(jax.random.PRNGKey(0), case)
        kx, kw, kb = jax.random.split(key, 3)

        # nn.Linear-style init; weight stored transposed as (d_model, vocab).
        limit = 1.0 / (d_model ** 0.5)
        weight = jax.random.uniform(kw, (d_model, vocab_size), jnp.float32,
                                    -limit, limit)
        bias = jax.random.uniform(kb, (vocab_size,), jnp.float32,
                                  -limit, limit)
        x = jax.random.normal(kx, (batch, seq, d_model), jnp.float32)

        # Store the projection weight in the compute dtype (bf16) so the
        # kernel does not pay an f32->bf16 cast of (D, V) every call.
        w_bf16 = weight.astype(jnp.bfloat16)

        out = projection_layer(x, w_bf16, bias)
        out = jax.block_until_ready(out)
        assert out.shape == (batch, seq, vocab_size)

        # Reference (same semantics as torch.log_softmax(self.proj(x), -1)).
        # Kernel runs the matmul on bf16-rounded operands with f32
        # accumulation, so compare tightly against a reference built from the
        # same rounded operands.
        x_bf = x.astype(jnp.bfloat16).astype(jnp.float32)
        w_bf = w_bf16.astype(jnp.float32)
        ref_bf = jax.nn.log_softmax(x_bf @ w_bf + bias, axis=-1)
        assert jnp.allclose(out, ref_bf, atol=1e-4, rtol=1e-4), \
            f"case {case}: mismatch vs bf16-input reference"

        # Loose sanity check against the full-f32 reference.
        ref_f32 = jax.nn.log_softmax(x @ weight + bias, axis=-1)
        assert jnp.allclose(out, ref_f32, atol=5e-2, rtol=5e-2), \
            f"case {case}: mismatch vs f32 reference"

    # Small case: whole vocab in one tile -> fused normalization path.
    _check(batch=2, seq=8, d_model=32, vocab_size=128, case=0)
    # Larger vocab: exercises vocab tiling + online LSE + in-place epilogue.
    _check(batch=2, seq=8, d_model=64, vocab_size=4096, case=1)

    print("KERNEL_OK")
</pallas_src>

<mosaic_0001>
module attributes {stable_mosaic.version = 11 : i64} {
  func.func @_proj_logits_kernel(%arg0: i32, %arg1: i32, %arg2: i32, %arg3: memref<16x128xbf16, #tpu.memory_space<vmem>>, %arg4: memref<128x128xbf16, #tpu.memory_space<vmem>>, %arg5: memref<1x128xf32, #tpu.memory_space<vmem>>, %arg6: memref<16x128xf32, #tpu.memory_space<vmem>>, %arg7: memref<16x1xf32, #tpu.memory_space<vmem>>, %arg8: memref<16x1xf32, #tpu.memory_space<vmem>>, %arg9: memref<16x1xf32, #tpu.memory_space<vmem>>) attributes {dimension_semantics = [#tpu.dimension_semantics<parallel>, #tpu.dimension_semantics<arbitrary>, #tpu.dimension_semantics<arbitrary>], iteration_bounds = array<i64: 1, 1, 1>, scalar_prefetch = 0 : i64, scratch_operands = 2 : i64, tpu.core_type = #tpu.core_type<tc>, window_params = [{transform_indices = @transform_0, window_bounds = array<i64: 16, 128>}, {transform_indices = @transform_1, window_bounds = array<i64: 128, 128>}, {transform_indices = @transform_2, window_bounds = array<i64: 1, 128>}, {transform_indices = @transform_3, window_bounds = array<i64: 16, 128>}, {transform_indices = @transform_4, window_bounds = array<i64: 16, 1>}]} {
    %c0_i32 = arith.constant 0 : i32
    %0 = arith.cmpi eq, %arg1, %c0_i32 : i32
    %c0_i32_0 = arith.constant 0 : i32
    %1 = arith.cmpi eq, %arg2, %c0_i32_0 : i32
    %2 = arith.andi %0, %1 : i1
    %3 = arith.extui %2 : i1 to i32
    %c0_i32_1 = arith.constant 0 : i32
    %4 = arith.cmpi ne, %3, %c0_i32_1 : i32
    scf.if %4 {
      %cst_16 = arith.constant -1.000000e+30 : f32
      %22 = vector.broadcast %cst_16 : f32 to vector<16x1xf32>
      %c0_17 = arith.constant 0 : index
      %c0_18 = arith.constant 0 : index
      %23 = vector.load %arg8[%c0_17, %c0_18] : memref<16x1xf32, #tpu.memory_space<vmem>>, vector<16x1xf32>
      tpu.vector_store %arg8[%c0_17, %c0_18], %22 {strides = array<i32>} : memref<16x1xf32, #tpu.memory_space<vmem>>, vector<16x1xf32>,
      %cst_19 = arith.constant 0.000000e+00 : f32
      %24 = vector.broadcast %cst_19 : f32 to vector<16x1xf32>
      %c0_20 = arith.constant 0 : index
      %c0_21 = arith.constant 0 : index
      %25 = vector.load %arg9[%c0_20, %c0_21] : memref<16x1xf32, #tpu.memory_space<vmem>>, vector<16x1xf32>
      tpu.vector_store %arg9[%c0_20, %c0_21], %24 {strides = array<i32>} : memref<16x1xf32, #tpu.memory_space<vmem>>, vector<16x1xf32>,
    } else {
    }
    %c0_i32_2 = arith.constant 0 : i32
    %5 = arith.cmpi eq, %arg2, %c0_i32_2 : i32
    %6 = arith.extui %5 : i1 to i32
    %c0_i32_3 = arith.constant 0 : i32
    %7 = arith.cmpi ne, %6, %c0_i32_3 : i32
    scf.if %7 {
      %c0_16 = arith.constant 0 : index
      %c0_17 = arith.constant 0 : index
      %22 = vector.load %arg5[%c0_16, %c0_17] : memref<1x128xf32, #tpu.memory_space<vmem>>, vector<1x128xf32>
      %23 = vector.shape_cast %22 : vector<1x128xf32> to vector<1x128xf32>
      %24 = vector.broadcast %23 : vector<1x128xf32> to vector<16x128xf32>
      %c0_18 = arith.constant 0 : index
      %c0_19 = arith.constant 0 : index
      %25 = vector.load %arg6[%c0_18, %c0_19] : memref<16x128xf32, #tpu.memory_space<vmem>>, vector<16x128xf32>
      tpu.vector_store %arg6[%c0_18, %c0_19], %24 {strides = array<i32>} : memref<16x128xf32, #tpu.memory_space<vmem>>, vector<16x128xf32>,
    } else {
    }
    %c0 = arith.constant 0 : index
    %c0_4 = arith.constant 0 : index
    %8 = vector.load %arg6[%c0, %c0_4] : memref<16x128xf32, #tpu.memory_space<vmem>>, vector<16x128xf32>
    %c0_5 = arith.constant 0 : index
    %c0_6 = arith.constant 0 : index
    %9 = vector.load %arg3[%c0_5, %c0_6] : memref<16x128xbf16, #tpu.memory_space<vmem>>, vector<16x128xbf16>
    %c0_7 = arith.constant 0 : index
    %c0_8 = arith.constant 0 : index
    %10 = vector.load %arg4[%c0_7, %c0_8] : memref<128x128xbf16, #tpu.memory_space<vmem>>, vector<128x128xbf16>
    %cst = arith.constant dense<0.000000e+00> : vector<16x128xf32>
    %11 = tpu.matmul %9, %10, %cst {dimension_numbers = #tpu.dot_dimension_numbers<[1], [0], [0], [1], [0, 0, 1, 1], [], []>} : vector<16x128xbf16>, vector<128x128xbf16>, vector<16x128xf32> -> vector<16x128xf32>
    %12 = arith.addf %8, %11 : vector<16x128xf32>
    %c0_9 = arith.constant 0 : index
    %c0_10 = arith.constant 0 : index
    %13 = vector.load %arg6[%c0_9, %c0_10] : memref<16x128xf32, #tpu.memory_space<vmem>>, vector<16x128xf32>
    tpu.vector_store %arg6[%c0_9, %c0_10], %12 {strides = array<i32>} : memref<16x128xf32, #tpu.memory_space<vmem>>, vector<16x128xf32>,
    %c0_i32_11 = arith.constant 0 : i32
    %14 = arith.cmpi eq, %arg2, %c0_i32_11 : i32
    %15 = arith.extui %14 : i1 to i32
    %c0_i32_12 = arith.constant 0 : i32
    %16 = arith.cmpi ne, %15, %c0_i32_12 : i32
    scf.if %16 {
      %c0_16 = arith.constant 0 : index
      %c0_17 = arith.constant 0 : index
      %22 = vector.load %arg6[%c0_16, %c0_17] : memref<16x128xf32, #tpu.memory_space<vmem>>, vector<16x128xf32>
      %c0_18 = arith.constant 0 : index
      %c0_19 = arith.constant 0 : index
      %23 = vector.load %arg8[%c0_18, %c0_19] : memref<16x1xf32, #tpu.memory_space<vmem>>, vector<16x1xf32>
      %cst_20 = arith.constant dense<0xFF800000> : vector<16xf32>
      %24 = vector.multi_reduction <maximumf>, %22, %cst_20 [1] : vector<16x128xf32> to vector<16xf32>
      %25 = vector.shape_cast %24 : vector<16xf32> to vector<16x1xf32>
      %26 = arith.maximumf %23, %25 : vector<16x1xf32>
      %c0_21 = arith.constant 0 : index
      %c0_22 = arith.constant 0 : index
      %27 = vector.load %arg9[%c0_21, %c0_22] : memref<16x1xf32, #tpu.memory_space<vmem>>, vector<16x1xf32>
      %c0_23 = arith.constant 0 : index
      %c0_24 = arith.constant 0 : index
      %28 = vector.load %arg8[%c0_23, %c0_24] : memref<16x1xf32, #tpu.memory_space<vmem>>, vector<16x1xf32>
      %29 = arith.subf %28, %26 : vector<16x1xf32>
      %30 = math.exp %29 : vector<16x1xf32>
      %31 = arith.mulf %27, %30 : vector<16x1xf32>
      %32 = vector.broadcast %26 : vector<16x1xf32> to vector<16x128xf32>
      %33 = arith.subf %22, %32 : vector<16x128xf32>
      %34 = math.exp %33 : vector<16x128xf32>
      %cst_25 = arith.constant dense<0.000000e+00> : vector<16xf32>
      %35 = vector.multi_reduction <add>, %34, %cst_25 [1] : vector<16x128xf32> to vector<16xf32>
      %36 = vector.shape_cast %35 : vector<16xf32> to vector<16x1xf32>
      %37 = arith.addf %31, %36 : vector<16x1xf32>
      %c0_26 = arith.constant 0 : index
      %c0_27 = arith.constant 0 : index
      %38 = vector.load %arg9[%c0_26, %c0_27] : memref<16x1xf32, #tpu.memory_space<vmem>>, vector<16x1xf32>
      tpu.vector_store %arg9[%c0_26, %c0_27], %37 {strides = array<i32>} : memref<16x1xf32, #tpu.memory_space<vmem>>, vector<16x1xf32>,
      %c0_28 = arith.constant 0 : index
      %c0_29 = arith.constant 0 : index
      %39 = vector.load %arg8[%c0_28, %c0_29] : memref<16x1xf32, #tpu.memory_space<vmem>>, vector<16x1xf32>
      tpu.vector_store %arg8[%c0_28, %c0_29], %26 {strides = array<i32>} : memref<16x1xf32, #tpu.memory_space<vmem>>, vector<16x1xf32>,
    } else {
    }
    %c0_i32_13 = arith.constant 0 : i32
    %17 = arith.cmpi eq, %arg2, %c0_i32_13 : i32
    %c0_i32_14 = arith.constant 0 : i32
    %18 = arith.cmpi eq, %arg1, %c0_i32_14 : i32
    %19 = arith.andi %17, %18 : i1
    %20 = arith.extui %19 : i1 to i32
    %c0_i32_15 = arith.constant 0 : i32
    %21 = arith.cmpi ne, %20, %c0_i32_15 : i32
    scf.if %21 {
      %c0_16 = arith.constant 0 : index
      %c0_17 = arith.constant 0 : index
      %22 = vector.load %arg8[%c0_16, %c0_17] : memref<16x1xf32, #tpu.memory_space<vmem>>, vector<16x1xf32>
      %c0_18 = arith.constant 0 : index
      %c0_19 = arith.constant 0 : index
      %23 = vector.load %arg9[%c0_18, %c0_19] : memref<16x1xf32, #tpu.memory_space<vmem>>, vector<16x1xf32>
      %24 = math.log %23 : vector<16x1xf32>
      %25 = arith.addf %22, %24 : vector<16x1xf32>
      %c0_20 = arith.constant 0 : index
      %c0_21 = arith.constant 0 : index
      %26 = vector.load %arg7[%c0_20, %c0_21] : memref<16x1xf32, #tpu.memory_space<vmem>>, vector<16x1xf32>
      tpu.vector_store %arg7[%c0_20, %c0_21], %25 {strides = array<i32>} : memref<16x1xf32, #tpu.memory_space<vmem>>, vector<16x1xf32>,
      %c0_22 = arith.constant 0 : index
      %c0_23 = arith.constant 0 : index
      %27 = vector.load %arg6[%c0_22, %c0_23] : memref<16x128xf32, #tpu.memory_space<vmem>>, vector<16x128xf32>
      %28 = vector.broadcast %25 : vector<16x1xf32> to vector<16x128xf32>
      %29 = arith.subf %27, %28 : vector<16x128xf32>
      %c0_24 = arith.constant 0 : index
      %c0_25 = arith.constant 0 : index
      %30 = vector.load %arg6[%c0_24, %c0_25] : memref<16x128xf32, #tpu.memory_space<vmem>>, vector<16x128xf32>
      tpu.vector_store %arg6[%c0_24, %c0_25], %29 {strides = array<i32>} : memref<16x128xf32, #tpu.memory_space<vmem>>, vector<16x128xf32>,
    } else {
    }
    return
  }
  func.func @transform_0(%arg0: i32, %arg1: i32, %arg2: i32) -> (i32, i32) {
    %c0_i32 = arith.constant 0 : i32
    return %arg0, %arg2 : i32, i32
  }
  func.func @transform_1(%arg0: i32, %arg1: i32, %arg2: i32) -> (i32, i32) {
    %c0_i32 = arith.constant 0 : i32
    return %arg2, %arg1 : i32, i32
  }
  func.func @transform_2(%arg0: i32, %arg1: i32, %arg2: i32) -> (i32, i32) {
    %c0_i32 = arith.constant 0 : i32
    %c0_i32_0 = arith.constant 0 : i32
    return %c0_i32, %arg1 : i32, i32
  }
  func.func @transform_3(%arg0: i32, %arg1: i32, %arg2: i32) -> (i32, i32) {
    %c0_i32 = arith.constant 0 : i32
    return %arg0, %arg1 : i32, i32
  }
  func.func @transform_4(%arg0: i32, %arg1: i32, %arg2: i32) -> (i32, i32) {
    %c0_i32 = arith.constant 0 : i32
    %c0_i32_0 = arith.constant 0 : i32
    return %arg0, %c0_i32 : i32, i32
  }
}

</mosaic_0001>

<llo_original>
// kernel: projection_layer.1
$region0: #{projection_layer.1}
  #allocation0 [shape = 'u32[]', space=smem, size = 0x4, offset = 0x4, fixed_abs, tag = 'smem constant byte address 0x4 - core index']
  #allocation1 [shape = 'u32[144,128]{1,0:T(1,128)}', space=vmem, size = 0x12000, scoped, tag = 'internal scratch']
  #allocation2 [shape = 'f32[16,1]{1,0:T(8,128)}', space=vmem, size = 0x2000, scoped, tag = 'scratch operand']
  #allocation3 [shape = 'f32[16,1]{1,0:T(8,128)}', space=vmem, size = 0x2000, scoped, tag = 'scratch operand']
  %s0 = inlined_call_operand.vmem [shape: bf16[16,128], index: 0, kind: input, shape index: {}]
  %s1 = inlined_call_operand.vmem [shape: bf16[128,128], index: 1, kind: input, shape index: {}]
  %s2 = inlined_call_operand.vmem [shape: f32[1,128], index: 2, kind: input, shape index: {}]
  %s3 = inlined_call_operand.hbm [shape: f32[16,128], index: 3, kind: output, shape index: {0}]
  %s4 = inlined_call_operand.hbm [shape: f32[16,1], index: 4, kind: output, shape index: {1}]
  %5 = xla_tuple %s3, %s4
  %s6 = sld [smem:[#allocation0]]
  $region46: #{projection_layer.1} parent=0
    _
  %s8 = ssub.s32 1, %s6
  %s9 = scalar_select 0, %s8, %s6
  $region1: #{projection_layer.1} parent=0
    #allocation4 [shape = 'u8[8192]{0}', space=vmem, size = 0x2000, scoped, tag = 'output window, operand 0, single buffered']
    #allocation5 [shape = 's32[1]{0}', space=sflag, size = 0x4, scoped, tag = 'scoped memory for projection_layer.1']
    #allocation6 [shape = 'u8[8192]{0}', space=vmem, size = 0x2000, scoped, tag = 'output window, operand 1, single buffered']
    #allocation7 [shape = 's32[1]{0}', space=sflag, size = 0x4, scoped, tag = 'scoped memory for projection_layer.1']
    %10 = vsyncpa [#allocation5], 0
    %11 = vsyncpa [#allocation7], 0
    // Predicated region
    $region2: #{projection_layer.1} parent=1 // pred_check
      _
    $region3: #{projection_layer.1} parent=1 // pred_check_branch
      %13 = sbr.rel (0) target = $region5
    $region4: #{projection_layer.1} parent=1 // pred_region
      _
    $region5: #{projection_layer.1} parent=1 // pred_fallthru
      _
    // Predicated region
    $region6: #{projection_layer.1} parent=1 // pred_check
      _
    $region7: #{projection_layer.1} parent=1 // pred_check_branch
      %15 = sbr.rel (0) target = $region9
    $region8: #{projection_layer.1} parent=1 // pred_region
      _
    $region9: #{projection_layer.1} parent=1 // pred_fallthru
      _
    // Predicated region
    $region10: #{projection_layer.1} parent=1 // pred_check
      _
    $region11: #{projection_layer.1} parent=1 // pred_check_branch
      %17 = sbr.rel (0) target = $region13
    $region12: #{projection_layer.1} parent=1 // pred_region
      _
    $region13: #{projection_layer.1} parent=1 // pred_fallthru
      _
    %p19 = scmp.eq.s32.totalorder 0, 0
    %p20 = scmp.eq.s32.totalorder 0, 0
    %p21 = pnand %p19, %p20
    %p22 = pneg %p21
    // Predicated region
    $region14: #{projection_layer.1} parent=1 // pred_check
      _
    $region15: #{projection_layer.1} parent=1 // pred_check_branch
      %24 = sbr.rel (%p21) target = $region17
    $region16: #{projection_layer.1} parent=1 // pred_region
      %vm25 = vcmask 7168
      %26 = vst.msk [vmem:[#allocation2] sm:$0xff] %vm25, -1e+30
      %27 = vst.msk [vmem:[#allocation2 + $0x8] sm:$0xff] %vm25, -1e+30
      %28 = vst.msk [vmem:[#allocation3] sm:$0xff] %vm25, 0.0
      %29 = vst.msk [vmem:[#allocation3 + $0x8] sm:$0xff] %vm25, 0.0
    $region17: #{projection_layer.1} parent=1 // pred_fallthru
      _
    // Predicated region
    $region18: #{projection_layer.1} parent=1 // pred_check
      %p30 = pneg %p20
    $region19: #{projection_layer.1} parent=1 // pred_check_branch
      %32 = sbr.rel (%p30) target = $region21
    $region20: #{projection_layer.1} parent=1 // pred_region
      %v33 = vld [vmem:[%s2] sm:$0x1]
      %v35 = vlaneseq
      %v36 = vshrl.u32 %v35, 7
      %v37 = vsub.s32 0, %v36
      %v38 = vrot.slane %v33, %v37
      %40 = vst [vmem:[#allocation4] sm:$0xff] %v38
      %41 = vst [vmem:[#allocation4 + $0x8] sm:$0xff] %v38
    $region21: #{projection_layer.1} parent=1 // pred_fallthru
      _
    %v42 = vld [vmem:[#allocation4] sm:$0xff]
    %v43 = vld [vmem:[#allocation4 + $0x8] sm:$0xff]
    %v44 = vld [vmem:[%s0] sm:$0xf]
    %v45 = vld [vmem:[%s0 + $0x4] sm:$0xf]
    %v46 = vld [vmem:[%s1] sm:$0xf]
    %v47 = vld [vmem:[%s1 + $0x4] sm:$0xf]
    %v48 = vld [vmem:[%s1 + $0x8] sm:$0xf]
    %v49 = vld [vmem:[%s1 + $0xc] sm:$0xf]
    %v50 = vld [vmem:[%s1 + $0x10] sm:$0xf]
    %v51 = vld [vmem:[%s1 + $0x14] sm:$0xf]
    %v52 = vld [vmem:[%s1 + $0x18] sm:$0xf]
    %v53 = vld [vmem:[%s1 + $0x1c] sm:$0xf]
    %v54 = vld [vmem:[%s1 + $0x20] sm:$0xf]
    %v55 = vld [vmem:[%s1 + $0x24] sm:$0xf]
    %v56 = vld [vmem:[%s1 + $0x28] sm:$0xf]
    %v57 = vld [vmem:[%s1 + $0x2c] sm:$0xf]
    %v58 = vld [vmem:[%s1 + $0x30] sm:$0xf]
    %v59 = vld [vmem:[%s1 + $0x34] sm:$0xf]
    %v60 = vld [vmem:[%s1 + $0x38] sm:$0xf]
    %v61 = vld [vmem:[%s1 + $0x3c] sm:$0xf]
    %v64 = vunpack.c.l.b16 %v44
    %v65 = vunpack.c.l.b16 %v45
    %v66 = vpack.c.b16 %v65, %v64
    %v84 = vunpack.c.l.b16 %v46
    %v85 = vunpack.c.l.b16 %v47
    %v86 = vunpack.c.l.b16 %v48
    %v87 = vunpack.c.l.b16 %v49
    %v88 = vunpack.c.l.b16 %v50
    %v89 = vunpack.c.l.b16 %v51
    %v90 = vunpack.c.l.b16 %v52
    %v91 = vunpack.c.l.b16 %v53
    %v92 = vunpack.c.l.b16 %v54
    %v93 = vunpack.c.l.b16 %v55
    %v94 = vunpack.c.l.b16 %v56
    %v95 = vunpack.c.l.b16 %v57
    %v96 = vunpack.c.l.b16 %v58
    %v97 = vunpack.c.l.b16 %v59
    %v98 = vunpack.c.l.b16 %v60
    %v99 = vunpack.c.l.b16 %v61
    %v100 = vpack.c.b16 %v85, %v84
    %v101 = vpack.c.b16 %v87, %v86
    %v102 = vpack.c.b16 %v89, %v88
    %v103 = vpack.c.b16 %v91, %v90
    %v104 = vpack.c.b16 %v93, %v92
    %v105 = vpack.c.b16 %v95, %v94
    %v106 = vpack.c.b16 %v97, %v96
    %v107 = vpack.c.b16 %v99, %v98
    %116 = vmatprep.subr.bf16.mxu0 0
    %117 = vmatpush1.bf16.msra.mxu0 %v100
    %118 = vmatprep.subr.bf16.mxu0 0
    %119 = vmatpush1.bf16.msra.mxu0 %v101
    %120 = vmatprep.subr.bf16.mxu0 0
    %121 = vmatpush1.bf16.msra.mxu0 %v102
    %122 = vmatprep.subr.bf16.mxu0 0
    %123 = vmatpush1.bf16.msra.mxu0 %v103
    %124 = vmatprep.subr.bf16.mxu0 0
    %125 = vmatpush1.bf16.msra.mxu0 %v104
    %126 = vmatprep.subr.bf16.mxu0 0
    %127 = vmatpush1.bf16.msra.mxu0 %v105
    %128 = vmatprep.subr.bf16.mxu0 0
    %129 = vmatpush1.bf16.msra.mxu0 %v106
    %130 = vmatprep.subr.bf16.mxu0 0
    %131 = vmatpush1.bf16.msra.mxu0 %v107
    %132 = vmatprep.subr.bf16.mxu0 0
    %133 = vmatpush1.bf16.msra.mxu0 0
    %134 = vmatprep.subr.bf16.mxu0 0
    %135 = vmatpush1.bf16.msra.mxu0 0
    %136 = vmatprep.subr.bf16.mxu0 0
    %137 = vmatpush1.bf16.msra.mxu0 0
    %138 = vmatprep.subr.bf16.mxu0 0
    %139 = vmatpush1.bf16.msra.mxu0 0
    %140 = vmatprep.subr.bf16.mxu0 0
    %141 = vmatpush1.bf16.msra.mxu0 0
    %142 = vmatprep.subr.bf16.mxu0 0
    %143 = vmatpush1.bf16.msra.mxu0 0
    %144 = vmatprep.subr.bf16.mxu0 0
    %145 = vmatpush1.bf16.msra.mxu0 0
    %146 = vmatprep.subr.bf16.mxu0 0
    %147 = vmatpush1.bf16.msra.mxu0 0
    %148 = vmatprep.mubr.bf16.mxu0 0
    %149 = vmatmul.mubr.bf16.gmra.mrb[0].mxu0 %v66
    %v150 = vpop.f32.mrb[0].mxu0
    %v151 = vadd.f32 0.0, %v150
    %v152 = vpop.f32.mrb[0].mxu0
    %v153 = vpop.f32.mrb[0].mxu0
    %v154 = vadd.f32 0.0, %v153
    %v155 = vpop.f32.mrb[0].mxu0
    %156 = vdwg.mxu0
    %v157 = vadd.f32 %v42, %v151
    %v158 = vadd.f32 %v43, %v154
    %159 = vst [vmem:[#allocation4] sm:$0xff] %v157
    %160 = vst [vmem:[#allocation4 + $0x8] sm:$0xff] %v158
    // Predicated region
    $region22: #{projection_layer.1} parent=1 // pred_check
      %p161 = pneg %p20
    $region23: #{projection_layer.1} parent=1 // pred_check_branch
      %163 = sbr.rel (%p161) target = $region25
    $region24: #{projection_layer.1} parent=1 // pred_region
      %v164 = vld [vmem:[#allocation4] sm:$0xff]
      %v165 = vld [vmem:[#allocation4 + $0x8] sm:$0xff]
      %v166 = vld [vmem:[#allocation2] sm:$0xff]
      %v167 = vld [vmem:[#allocation2 + $0x8] sm:$0xff]
      %168 = vmax.xlane.f32.xlu0 %v164
      %v169 = vpop.xlane.xlu0 %168
      %170 = vmax.xlane.f32.xlu0 %v165
      %v171 = vpop.xlane.xlu0 %170
      %v172 = vmax.f32 %v166, %v169
      %v173 = vmax.f32 %v167, %v171
      %v174 = vld [vmem:[#allocation3] sm:$0xff]
      %v175 = vld [vmem:[#allocation3 + $0x8] sm:$0xff]
      %v176 = vsub.f32 %v166, %v172
      %v177 = vsub.f32 %v167, %v173
      %v178 = vmul.f32 %v176, 1.442695
      %v179 = vpow.pop %v178
      %v180 = vmul.f32 %v177, 1.442695
      %v181 = vpow.pop %v180
      %v182 = vmul.f32 %v174, %v179
      %v183 = vmul.f32 %v175, %v181
      %185 = vset.pattern.permute.xlu0 0
      %186 = vperm.xlu0 %185, %v172
      %v187 = vpop.permute.xlu0 %186
      %190 = vset.pattern.permute.xlu0 0
      %191 = vperm.xlu0 %190, %v173
      %v192 = vpop.permute.xlu0 %191
      %v194 = vsub.f32 %v164, %v187
      %v195 = vsub.f32 %v165, %v192
      %v196 = vmul.f32 %v194, 1.442695
      %v197 = vpow.pop %v196
      %v198 = vmul.f32 %v195, 1.442695
      %v199 = vpow.pop %v198
      %200 = vadd.xlane.f32.xlu0 %v197
      %v201 = vpop.xlane.xlu0 %200
      %202 = vadd.xlane.f32.xlu0 %v199
      %v203 = vpop.xlane.xlu0 %202
      %v204 = vadd.f32 %v182, %v201
      %v205 = vadd.f32 %v183, %v203
      %vm206 = vcmask 7168
      %207 = vst.msk [vmem:[#allocation3] sm:$0xff] %vm206, %v204
      %208 = vst.msk [vmem:[#allocation3 + $0x8] sm:$0xff] %vm206, %v205
      %209 = vst.msk [vmem:[#allocation2] sm:$0xff] %vm206, %v172
      %210 = vst.msk [vmem:[#allocation2 + $0x8] sm:$0xff] %vm206, %v173
    $region25: #{projection_layer.1} parent=1 // pred_fallthru
      _
    // Predicated region
    $region26: #{projection_layer.1} parent=1 // pred_check
      _
    $region27: #{projection_layer.1} parent=1 // pred_check_branch
      %212 = sbr.rel (%p21) target = $region29
    $region28: #{projection_layer.1} parent=1 // pred_region
      %v213 = vld [vmem:[#allocation2] sm:$0xff]
      %v214 = vld [vmem:[#allocation2 + $0x8] sm:$0xff]
      %v215 = vld [vmem:[#allocation3] sm:$0xff]
      %v216 = vld [vmem:[#allocation3 + $0x8] sm:$0xff]
      %v217 = vlog2.pop %v215
      %v218 = vmul.f32 %v217, 0.6931472
      %v219 = vlog2.pop %v216
      %v220 = vmul.f32 %v219, 0.6931472
      %v221 = vadd.f32 %v213, %v218
      %v222 = vadd.f32 %v214, %v220
      %vm223 = vcmask 7168
      %224 = vst.msk [vmem:[#allocation6] sm:$0xff] %vm223, %v221
      %225 = vst.msk [vmem:[#allocation6 + $0x8] sm:$0xff] %vm223, %v222
      %v226 = vld [vmem:[#allocation4] sm:$0xff]
      %v227 = vld [vmem:[#allocation4 + $0x8] sm:$0xff]
      %229 = vset.pattern.permute.xlu0 0
      %230 = vperm.xlu0 %229, %v221
      %v231 = vpop.permute.xlu0 %230
      %234 = vset.pattern.permute.xlu0 0
      %235 = vperm.xlu0 %234, %v222
      %v236 = vpop.permute.xlu0 %235
      %v238 = vsub.f32 %v226, %v231
      %v239 = vsub.f32 %v227, %v236
      %240 = vst [vmem:[#allocation4] sm:$0xff] %v238
      %241 = vst [vmem:[#allocation4 + $0x8] sm:$0xff] %v239
    $region29: #{projection_layer.1} parent=1 // pred_fallthru
      _
    // Predicated region
    $region30: #{projection_layer.1} parent=1 // pred_check
      _
    $region31: #{projection_layer.1} parent=1 // pred_check_branch
      %243 = sbr.rel (0) target = $region33
    $region32: #{projection_layer.1} parent=1 // pred_region
      %s245 = ssub.s32 256, 256
      %246 = vsyncadd [#allocation5], %s245
      %s247 = sshll.u32 [#allocation4], 4
      %s248 = int_to_ptr.vmem [resolvable:$true] %s247
      %253 = dma.vmem_to_hbm [thread:$0]  %s248, 256, %s3, [#allocation5], 128, 128, 8
    $region33: #{projection_layer.1} parent=1 // pred_fallthru
      _
    // Predicated region
    $region34: #{projection_layer.1} parent=1 // pred_check
      _
    $region35: #{projection_layer.1} parent=1 // pred_check_branch
      %255 = sbr.rel (0) target = $region37
    $region36: #{projection_layer.1} parent=1 // pred_region
      %s257 = ssub.s32 256, 256
      %258 = vsyncadd [#allocation7], %s257
      %s259 = sshll.u32 [#allocation6], 4
      %s260 = int_to_ptr.vmem [resolvable:$true] %s259
      %265 = dma.vmem_to_hbm [thread:$0]  %s260, 256, %s4, [#allocation7], 128, 128, 8
    $region37: #{projection_layer.1} parent=1 // pred_fallthru
      _
    // Predicated region
    $region38: #{projection_layer.1} parent=1 // pred_check
      _
    $region39: #{projection_layer.1} parent=1 // pred_check_branch
      %267 = sbr.rel (0) target = $region41
    $region40: #{projection_layer.1} parent=1 // pred_region
      %268 = dma.done [#allocation5], 256
    $region41: #{projection_layer.1} parent=1 // pred_fallthru
      _
    // Predicated region
    $region42: #{projection_layer.1} parent=1 // pred_check
      _
    $region43: #{projection_layer.1} parent=1 // pred_check_branch
      %270 = sbr.rel (0) target = $region45
    $region44: #{projection_layer.1} parent=1 // pred_region
      %271 = dma.done [#allocation7], 256
    $region45: #{projection_layer.1} parent=1 // pred_fallthru
      _
    %272 = vsyncpa [#allocation5], 1
    %273 = vsyncpa [#allocation7], 1

</llo_original>
